<compile_context>
chip_gen: v5e
topology: v5e:2x2
jax: 0.10.0
libtpu: 0.0.40
codegen_flags: <defaults>
</compile_context>

<pallas_src>
import functools

import jax
import jax.numpy as jnp
from jax import lax
from jax.experimental import pallas as pl
from jax.experimental.pallas import tpu as pltpu


_DEFAULT_VMEM_CAPACITY = 64 * 1024 * 1024   # conservative: v7x per-TC VMEM
_DEFAULT_ONE_HOT_MAX_VOCAB = 2048           # one-hot MXU gather up to this vocab
_DEFAULT_BLOCK_TOKENS = 256


def _round_up(x, m):
    return ((x + m - 1) // m) * m


def _vmem_capacity_bytes():
    try:
        return int(pltpu.get_tpu_info().vmem_capacity_bytes)
    except Exception:  # pragma: no cover - fallback if query unavailable
        return _DEFAULT_VMEM_CAPACITY


# ----------------------------------------------------------------------------
# Kernels
# ----------------------------------------------------------------------------
def _embed_onehot_kernel(ids_smem, ids_col_ref, table_ref, out_ref):
    """Small-vocab resident path: one-hot matmul on the MXU.

    ids_col_ref: (block_tokens, 1) int32 in VMEM.
    table_ref:   (vocab, d_model) VMEM view, resident across the grid.
    out_ref:     (block_tokens, d_model) dense output tile.
    """
    del ids_smem  # scalar-prefetched ids unused on this path
    block_tokens = out_ref.shape[0]
    vocab = table_ref.shape[0]

    ids_col = ids_col_ref[...]                                   # (T, 1) int32
    lane_iota = lax.broadcasted_iota(jnp.int32, (block_tokens, vocab), 1)
    onehot = jnp.where(lane_iota == ids_col, 1.0, 0.0).astype(table_ref.dtype)
    out_ref[...] = jnp.dot(
        onehot, table_ref[...],
        preferred_element_type=jnp.float32).astype(out_ref.dtype)


def _embed_resident_gather_kernel(ids_smem, table_ref, out_ref, *, block_tokens):
    """Resident-table path: gather rows in-VMEM, 8 rows per dense store.

    ids_smem:  (padded_tokens,) int32 in SMEM (scalar prefetch).
    table_ref: (vocab, d_model) VMEM view, resident across the grid.
    out_ref:   (block_tokens, d_model) dense output tile.
    """
    base = pl.program_id(0) * block_tokens
    n_groups = block_tokens // 8

    def gather_group(g, carry):
        rows = [table_ref[pl.ds(ids_smem[base + g * 8 + r], 1), :]
                for r in range(8)]
        row0 = pl.multiple_of(g * 8, 8)
        # One dense 8-sublane store per group (vs. 8 masked single-row stores).
        out_ref[pl.ds(row0, 8), :] = jnp.concatenate(rows, axis=0)
        return carry

    lax.fori_loop(0, n_groups, gather_group, 0, unroll=min(4, n_groups))


def _embed_hbm_gather_kernel(ids_smem, table_hbm, out_ref, sem, *, block_tokens):
    """Large-table path: per-row HBM DMAs straight into the output block.

    The table stays in HBM (memory_space=pl.ANY). One row-sized async copy is
    issued per token, all signalling the same DMA semaphore, with the final
    destination being the output VMEM block itself; a single aggregate wait
    (byte-count = whole block) drains them.
    """
    base = pl.program_id(0) * block_tokens

    def issue(t, carry):
        idx = ids_smem[base + t]
        pltpu.make_async_copy(table_hbm.at[idx], out_ref.at[t],
                              sem.at[0]).start()
        return carry

    lax.fori_loop(0, block_tokens, issue, 0, unroll=8)

    # DMA semaphores count bytes: one wait descriptor sized to the whole
    # (block_tokens, d_model) block drains all the row copies above.
    pltpu.make_async_copy(out_ref, out_ref, sem.at[0]).wait()
    # TODO(synk): software-pipeline row gathers across grid steps (manual
    # (2, T, D) buffer + per-slot sems) to overlap with output writeback.


# ----------------------------------------------------------------------------
# Wrapper == Embedder.forward (nn.Embedding lookup)
# ----------------------------------------------------------------------------
def embedder_forward(token_ids, embed_table, *, block_tokens=None,
                     resident_table_max_bytes=None,
                     one_hot_max_vocab=_DEFAULT_ONE_HOT_MAX_VOCAB,
                     force_hbm_gather=False):
    """Pallas equivalent of `Embedder.forward` (== nn.Embedding lookup)."""
    batch, seq = token_ids.shape
    vocab_size, d_model = embed_table.shape
    dtype = embed_table.dtype
    itemsize = jnp.dtype(dtype).itemsize

    # Lane-dense output: pad d_model up to a multiple of 128 (unpadded below).
    d_model_p = _round_up(d_model, 128)
    if d_model_p != d_model:
        embed_table = jnp.pad(embed_table, ((0, 0), (0, d_model_p - d_model)))

    flat_ids = token_ids.reshape(-1).astype(jnp.int32)
    # nn.Embedding raises on out-of-range ids; clamp defensively so a bad id
    # can never drive an out-of-bounds DMA / VMEM read.
    # TODO(synk): surface an error for out-of-range ids instead of clamping.
    flat_ids = jnp.clip(flat_ids, 0, vocab_size - 1)
    n_tok = flat_ids.shape[0]

    capacity = _vmem_capacity_bytes()
    row_bytes = d_model_p * itemsize

    # Sublane-dense token block (multiple of 8 rows), capped so the
    # double-buffered output block stays within ~1/4 of VMEM.
    if block_tokens is None:
        block_tokens = min(_DEFAULT_BLOCK_TOKENS, _round_up(n_tok, 8))
    block_tokens = max(8, _round_up(block_tokens, 8))
    max_block_by_vmem = max(8, (((capacity // 8) // row_bytes) // 8) * 8)
    block_tokens = min(block_tokens, max_block_by_vmem)

    padded_tok = _round_up(n_tok, block_tokens)
    if padded_tok != n_tok:
        flat_ids = jnp.pad(flat_ids, (0, padded_tok - n_tok))
    n_blocks = padded_tok // block_tokens
    # TODO(synk): guard the last partial block to skip padded-row work.

    table_bytes = vocab_size * d_model_p * itemsize
    out_block_bytes = block_tokens * row_bytes

    # Per-generation resident-table threshold. The resident table is counted
    # twice (Pallas double-buffers inputs even with a constant index_map),
    # plus double-buffered output blocks and headroom.
    if resident_table_max_bytes is None:
        resident_table_max_bytes = max(
            (int(capacity * 0.8) - 2 * out_block_bytes - (8 << 20)) // 2, 0)

    use_resident = (table_bytes <= resident_table_max_bytes
                    and not force_hbm_gather)
    use_onehot = use_resident and vocab_size <= one_hot_max_vocab

    flops = 0
    if use_onehot:
        kernel = _embed_onehot_kernel
        ids_col = flat_ids.reshape(padded_tok, 1)
        in_specs = [
            pl.BlockSpec((block_tokens, 1), lambda i, ids: (i, 0)),
            pl.BlockSpec((vocab_size, d_model_p), lambda i, ids: (0, 0)),
        ]
        call_args = (flat_ids, ids_col, embed_table)
        scratch_shapes = []
        table_traffic = table_bytes                          # table read once
        onehot_bytes = block_tokens * vocab_size * max(itemsize, 4)
        vmem_need = (2 * table_bytes + 2 * out_block_bytes
                     + 2 * onehot_bytes + 4 * block_tokens * 4)
        flops = 2 * padded_tok * vocab_size * d_model_p
    elif use_resident:
        kernel = functools.partial(_embed_resident_gather_kernel,
                                   block_tokens=block_tokens)
        in_specs = [pl.BlockSpec((vocab_size, d_model_p), lambda i, ids: (0, 0))]
        call_args = (flat_ids, embed_table)
        scratch_shapes = []
        table_traffic = table_bytes                          # table read once
        vmem_need = 2 * table_bytes + 2 * out_block_bytes
    else:
        kernel = functools.partial(_embed_hbm_gather_kernel,
                                   block_tokens=block_tokens)
        in_specs = [pl.BlockSpec(memory_space=pl.ANY)]       # raw HBM ref
        call_args = (flat_ids, embed_table)
        scratch_shapes = [pltpu.SemaphoreType.DMA((1,))]
        table_traffic = padded_tok * row_bytes               # one row per token
        vmem_need = 2 * out_block_bytes

    grid_spec = pltpu.PrefetchScalarGridSpec(
        num_scalar_prefetch=1,
        grid=(n_blocks,),
        in_specs=in_specs,
        out_specs=pl.BlockSpec((block_tokens, d_model_p), lambda i, ids: (i, 0)),
        scratch_shapes=scratch_shapes,
    )

    cost = pl.CostEstimate(
        flops=int(flops),
        transcendentals=0,
        bytes_accessed=int(padded_tok * 4              # token ids
                           + padded_tok * row_bytes    # output
                           + table_traffic),           # table reads
    )

    # Explicit VMEM budget: needed bytes + headroom, kept below this
    # generation's physical VMEM (64 MiB/TC on v7x, 128 MiB on v5e/v6e).
    vmem_limit = int(min(max(vmem_need + (8 << 20), 32 << 20),
                         int(capacity * 0.9)))
    vmem_limit = max(vmem_limit, int(vmem_need + (2 << 20)))

    out_flat = pl.pallas_call(
        kernel,
        out_shape=jax.ShapeDtypeStruct((padded_tok, d_model_p), dtype),
        grid_spec=grid_spec,
        compiler_params=pltpu.CompilerParams(
            dimension_semantics=("parallel",),   # token blocks are independent
            vmem_limit_bytes=vmem_limit),
        cost_estimate=cost,
    )(*call_args)

    out = out_flat[:n_tok]
    if d_model_p != d_model:
        out = out[:, :d_model]
    return out.reshape(batch, seq, d_model)


if __name__ == "__main__":
    # Small, deterministic example consistent with the module:
    #   vocab_size=128, d_model=128, batch=2, seq=8.
    vocab_size, d_model = 128, 128
    batch, seq = 2, 8

    key = jax.random.PRNGKey(0)
    k_ids, k_tab = jax.random.split(key)

    # nn.Embedding default init is N(0, 1).
    embed_table = jax.random.normal(k_tab, (vocab_size, d_model),
                                    dtype=jnp.float32)
    token_ids = jax.random.randint(k_ids, (batch, seq), 0, vocab_size,
                                   dtype=jnp.int32)

    # Reference == torch.nn.Embedding forward.
    ref = jnp.take(embed_table, token_ids, axis=0)

    # Path 1: small-vocab resident table -> one-hot MXU matmul.
    out_onehot = jax.block_until_ready(
        embedder_forward(token_ids, embed_table))
    assert out_onehot.shape == (batch, seq, d_model)
    assert out_onehot.dtype == jnp.float32
    assert jnp.allclose(out_onehot, ref), "one-hot resident path mismatch"

    # Path 2: resident table, grouped in-VMEM row gather (dense 8-row stores).
    out_grouped = jax.block_until_ready(
        embedder_forward(token_ids, embed_table, one_hot_max_vocab=0))
    assert jnp.allclose(out_grouped, ref), "resident grouped-gather mismatch"

    # Path 3: large-table fallback -- row DMAs straight from HBM into the
    # output block with one aggregate wait (forced here so it is validated).
    out_hbm = jax.block_until_ready(
        embedder_forward(token_ids, embed_table, force_hbm_gather=True))
    assert jnp.allclose(out_hbm, ref), "hbm-gather path mismatch"

    print("KERNEL_OK")
</pallas_src>

<mosaic_0001>
module attributes {stable_mosaic.version = 11 : i64} {
  func.func @_embed_onehot_kernel(%arg0: i32, %arg1: memref<16xi32, #tpu.memory_space<smem>>, %arg2: memref<16x1xi32, #tpu.memory_space<vmem>>, %arg3: memref<128x128xf32, #tpu.memory_space<vmem>>, %arg4: memref<16x128xf32, #tpu.memory_space<vmem>>) attributes {dimension_semantics = [#tpu.dimension_semantics<parallel>], iteration_bounds = array<i64: 1>, scalar_prefetch = 1 : i64, scratch_operands = 0 : i64, tpu.core_type = #tpu.core_type<tc>, window_params = [{transform_indices = @transform_0, window_bounds = array<i64: 16, 1>}, {pipeline_mode = #tpu.pipeline_mode<synchronous>, transform_indices = @transform_1, window_bounds = array<i64: 128, 128>}, {transform_indices = @transform_2, window_bounds = array<i64: 16, 128>}]} {
    %c0 = arith.constant 0 : index
    %c0_0 = arith.constant 0 : index
    %0 = vector.load %arg2[%c0, %c0_0] : memref<16x1xi32, #tpu.memory_space<vmem>>, vector<16x1xi32>
    %1 = tpu.iota {dimensions = array<i32: 1>} : vector<16x128xi32>
    %2 = vector.broadcast %0 : vector<16x1xi32> to vector<16x128xi32>
    %3 = arith.cmpi eq, %1, %2 : vector<16x128xi32>
    %cst = arith.constant 1.000000e+00 : f32
    %cst_1 = arith.constant 0.000000e+00 : f32
    %4 = vector.broadcast %cst : f32 to vector<16x128xf32>
    %5 = vector.broadcast %cst_1 : f32 to vector<16x128xf32>
    %6 = arith.select %3, %4, %5 : vector<16x128xi1>, vector<16x128xf32>
    %c0_2 = arith.constant 0 : index
    %c0_3 = arith.constant 0 : index
    %7 = vector.load %arg3[%c0_2, %c0_3] : memref<128x128xf32, #tpu.memory_space<vmem>>, vector<128x128xf32>
    %cst_4 = arith.constant dense<0.000000e+00> : vector<16x128xf32>
    %8 = tpu.matmul %6, %7, %cst_4 {dimension_numbers = #tpu.dot_dimension_numbers<[1], [0], [0], [1], [0, 0, 1, 1], [], []>} : vector<16x128xf32>, vector<128x128xf32>, vector<16x128xf32> -> vector<16x128xf32>
    %c0_5 = arith.constant 0 : index
    %c0_6 = arith.constant 0 : index
    %9 = vector.load %arg4[%c0_5, %c0_6] : memref<16x128xf32, #tpu.memory_space<vmem>>, vector<16x128xf32>
    tpu.vector_store %arg4[%c0_5, %c0_6], %8 {strides = array<i32>} : memref<16x128xf32, #tpu.memory_space<vmem>>, vector<16x128xf32>,
    return
  }
  func.func @transform_0(%arg0: i32, %arg1: memref<16xi32, #tpu.memory_space<smem>>) -> (i32, i32) {
    %c0_i32 = arith.constant 0 : i32
    %c0_i32_0 = arith.constant 0 : i32
    return %arg0, %c0_i32 : i32, i32
  }
  func.func @transform_1(%arg0: i32, %arg1: memref<16xi32, #tpu.memory_space<smem>>) -> (i32, i32) {
    %c0_i32 = arith.constant 0 : i32
    %c0_i32_0 = arith.constant 0 : i32
    %c0_i32_1 = arith.constant 0 : i32
    return %c0_i32, %c0_i32_0 : i32, i32
  }
  func.func @transform_2(%arg0: i32, %arg1: memref<16xi32, #tpu.memory_space<smem>>) -> (i32, i32) {
    %c0_i32 = arith.constant 0 : i32
    %c0_i32_0 = arith.constant 0 : i32
    return %arg0, %c0_i32 : i32, i32
  }
}

</mosaic_0001>

<llo_original>
// kernel: tpu_custom_call.1
$region0: #{tpu_custom_call.1}
  #allocation0 [shape = 'u32[]', space=smem, size = 0x4, offset = 0x4, fixed_abs, tag = 'smem constant byte address 0x4 - core index']
  #allocation1 [shape = 'u32[72,128]{1,0:T(1,128)}', space=vmem, size = 0x9000, scoped, tag = 'internal scratch']
  #allocation2 [shape = 's32[1]{0}', space=sflag, size = 0x4, scoped, tag = 'scoped memory for tpu_custom_call.1']
  #allocation3 [shape = 'u8[512]{0}', space=smem, size = 0x200, scoped, tag = 'prefetched SMEM operand 0']
  %s0 = inlined_call_operand.vmem [shape: s32[16], index: 0, kind: input, shape index: {}]
  %s1 = inlined_call_operand.vmem [shape: s32[16,1], index: 1, kind: input, shape index: {}]
  %s2 = inlined_call_operand.hbm [shape: f32[128,128], index: 2, kind: input, shape index: {}]
  %s3 = inlined_call_operand.hbm [shape: f32[16,128], index: 3, kind: output, shape index: {}]
  %s4 = sld [smem:[#allocation0]]
  $region22: #{tpu_custom_call.1} parent=0
    _
  %s6 = ssub.s32 1, %s4
  %s7 = scalar_select 0, %s6, %s4
  %s9 = sshll.u32 %s0, 4
  %s10 = int_to_ptr.vmem [resolvable:$true] %s9
  %12 = dma.vmem_to_smem %s10, 16, [#allocation3], [#allocation2]
  %14 = dma.done [#allocation2], 16
  %15 = sfence
  $region1: #{tpu_custom_call.1} parent=0
    #allocation4 [shape = 'u8[65536]{0}', space=vmem, size = 0x10000, scoped, tag = 'input window, operand 2, single buffered']
    #allocation5 [shape = 's32[1]{0}', space=sflag, size = 0x4, scoped, tag = 'scoped memory for tpu_custom_call.1']
    #allocation6 [shape = 's32[1]{0}', space=sflag, size = 0x4, scoped, tag = 'scoped memory for tpu_custom_call.1']
    #allocation7 [shape = 'u8[8192]{0}', space=vmem, size = 0x2000, scoped, tag = 'output window, operand 0, single buffered']
    %16 = vsyncpa [#allocation5], 0
    %17 = vsyncpa [#allocation6], 0
    // Predicated region
    $region2: #{tpu_custom_call.1} parent=1 // pred_check
      _
    $region3: #{tpu_custom_call.1} parent=1 // pred_check_branch
      %19 = sbr.rel (0) target = $region5
    $region4: #{tpu_custom_call.1} parent=1 // pred_region
      _
    $region5: #{tpu_custom_call.1} parent=1 // pred_fallthru
      _
    // Predicated region
    $region6: #{tpu_custom_call.1} parent=1 // pred_check
      _
    $region7: #{tpu_custom_call.1} parent=1 // pred_check_branch
      %21 = sbr.rel (0) target = $region9
    $region8: #{tpu_custom_call.1} parent=1 // pred_region
      %23 = vsyncadd [#allocation5], 0
      %s24 = sshll.u32 %s2, 4
      %s25 = int_to_ptr.hbm [resolvable:$true] %s24
      %s26 = sshll.u32 [#allocation4], 4
      %s27 = int_to_ptr.vmem [resolvable:$true] %s26
      %32 = dma.hbm_to_vmem [thread:$0]  %s25, 2048, %s27, [#allocation5], 128, 128, 8
    $region9: #{tpu_custom_call.1} parent=1 // pred_fallthru
      _
    // Predicated region
    $region10: #{tpu_custom_call.1} parent=1 // pred_check
      _
    $region11: #{tpu_custom_call.1} parent=1 // pred_check_branch
      %34 = sbr.rel (0) target = $region13
    $region12: #{tpu_custom_call.1} parent=1 // pred_region
      %36 = dma.done [#allocation5], 2048
    $region13: #{tpu_custom_call.1} parent=1 // pred_fallthru
      _
    %v37 = vld [vmem:[%s1] sm:$0xff]
    %v38 = vld [vmem:[%s1 + $0x8] sm:$0xff]
    %v39 = vlaneseq
    %v40 = vand.u32 %v39, 127
    %41 = vset.pattern.permute.xlu0 0
    %42 = vperm.xlu0 %41, %v37
    %v43 = vpop.permute.xlu0 %42
    %44 = vset.pattern.permute.xlu0 0
    %45 = vperm.xlu0 %44, %v38
    %v46 = vpop.permute.xlu0 %45
    %vm47 = vcmp.eq.s32.totalorder %v40, %v43
    %vm48 = vcmp.eq.s32.totalorder %v40, %v46
    %v49 = vsel %vm47, 1.0, 0.0
    %v50 = vsel %vm48, 1.0, 0.0
    %v51 = vld [vmem:[#allocation4] sm:$0xff]
    %v52 = vld [vmem:[#allocation4 + $0x8] sm:$0xff]
    %v53 = vld [vmem:[#allocation4 + $0x10] sm:$0xff]
    %v54 = vld [vmem:[#allocation4 + $0x18] sm:$0xff]
    %v55 = vld [vmem:[#allocation4 + $0x20] sm:$0xff]
    %v56 = vld [vmem:[#allocation4 + $0x28] sm:$0xff]
    %v57 = vld [vmem:[#allocation4 + $0x30] sm:$0xff]
    %v58 = vld [vmem:[#allocation4 + $0x38] sm:$0xff]
    %v59 = vld [vmem:[#allocation4 + $0x40] sm:$0xff]
    %v60 = vld [vmem:[#allocation4 + $0x48] sm:$0xff]
    %v61 = vld [vmem:[#allocation4 + $0x50] sm:$0xff]
    %v62 = vld [vmem:[#allocation4 + $0x58] sm:$0xff]
    %v63 = vld [vmem:[#allocation4 + $0x60] sm:$0xff]
    %v64 = vld [vmem:[#allocation4 + $0x68] sm:$0xff]
    %v65 = vld [vmem:[#allocation4 + $0x70] sm:$0xff]
    %v66 = vld [vmem:[#allocation4 + $0x78] sm:$0xff]
    %67 = vmatpush.msra.mxu0 %v66
    %68 = vmatpush.msra.mxu0 %v65
    %69 = vmatpush.msra.mxu0 %v64
    %70 = vmatpush.msra.mxu0 %v63
    %71 = vmatpush.msra.mxu0 %v62
    %72 = vmatpush.msra.mxu0 %v61
    %73 = vmatpush.msra.mxu0 %v60
    %74 = vmatpush.msra.mxu0 %v59
    %75 = vmatpush.msra.mxu0 %v58
    %76 = vmatpush.msra.mxu0 %v57
    %77 = vmatpush.msra.mxu0 %v56
    %78 = vmatpush.msra.mxu0 %v55
    %79 = vmatpush.msra.mxu0 %v54
    %80 = vmatpush.msra.mxu0 %v53
    %81 = vmatpush.msra.mxu0 %v52
    %82 = vmatpush.msra.mxu0 %v51
    %83 = vmatmul.f32.gmra.mxu0 %v49
    %v84 = vpop.f32.mrf.mxu0
    %v85 = vadd.f32 0.0, %v84
    %86 = vmatmul.f32.gmra.mxu0 %v50
    %v87 = vpop.f32.mrf.mxu0
    %v88 = vadd.f32 0.0, %v87
    %89 = vdwg.mxu0
    %90 = vst [vmem:[#allocation7] sm:$0xff] %v85
    %91 = vst [vmem:[#allocation7 + $0x8] sm:$0xff] %v88
    // Predicated region
    $region14: #{tpu_custom_call.1} parent=1 // pred_check
      _
    $region15: #{tpu_custom_call.1} parent=1 // pred_check_branch
      %93 = sbr.rel (0) target = $region17
    $region16: #{tpu_custom_call.1} parent=1 // pred_region
      %95 = vsyncadd [#allocation6], 0
      %s96 = sshll.u32 [#allocation7], 4
      %s97 = int_to_ptr.vmem [resolvable:$true] %s96
      %s98 = sshll.u32 %s3, 4
      %s99 = int_to_ptr.hbm [resolvable:$true] %s98
      %104 = dma.vmem_to_hbm [thread:$0]  %s97, 256, %s99, [#allocation6], 128, 128, 8
    $region17: #{tpu_custom_call.1} parent=1 // pred_fallthru
      _
    // Predicated region
    $region18: #{tpu_custom_call.1} parent=1 // pred_check
      _
    $region19: #{tpu_custom_call.1} parent=1 // pred_check_branch
      %106 = sbr.rel (0) target = $region21
    $region20: #{tpu_custom_call.1} parent=1 // pred_region
      %108 = dma.done [#allocation6], 256
    $region21: #{tpu_custom_call.1} parent=1 // pred_fallthru
      _
    %109 = vsyncpa [#allocation5], 1
    %110 = vsyncpa [#allocation6], 1

</llo_original>
